<compile_context>
chip_gen: v5e
topology: v5e:2x2
jax: 0.10.0
libtpu: 0.0.40
codegen_flags: <defaults>
</compile_context>

<pallas_src>
import functools

import jax
import jax.numpy as jnp
from jax import lax
from jax.experimental import pallas as pl
from jax.experimental.pallas import tpu as pltpu


def _round_up(x, m):
    return ((x + m - 1) // m) * m


def _vmem_budget_bytes():
    """~75% of this generation's physical VMEM (review: ~48 MiB on v7x,
    ~96 MiB on v5e/v6e) so tiles scale with the chip instead of a fixed cap."""
    cap = None
    try:
        cap = getattr(pltpu.get_tpu_info(), "vmem_capacity_bytes", None)
    except Exception:
        cap = None
    if not cap:
        cap = 64 * 1024 * 1024          # conservative fallback (v7x physical)
    return int(0.75 * cap)


# -----------------------------------------------------------------------------
# Kernel: out = patches @ W_adj^T + bias, tiled over (M, K) with f32 accumulator
# -----------------------------------------------------------------------------
def _conv_matmul_kernel(patches_ref, wadj_ref, bias_ref, out_ref, acc_ref):
    kk = pl.program_id(1)

    @pl.when(kk == 0)
    def _init():
        acc_ref[...] = jnp.zeros_like(acc_ref)

    acc_ref[...] += jnp.dot(patches_ref[...], wadj_ref[...],
                            preferred_element_type=jnp.float32)

    @pl.when(kk == pl.num_programs(1) - 1)
    def _finish():
        out_ref[...] = (acc_ref[...] + bias_ref[...].astype(jnp.float32)
                        ).astype(out_ref.dtype)


# -----------------------------------------------------------------------------
# im2col: NHWC slicing + stack + reshape only (no trailing transpose), so the
# producer is fusible into the pallas_call input stream.
# Feature order is (c, i, j), matching conv.weight.view(out_c, -1).
# -----------------------------------------------------------------------------
def _im2col_patches(x, kh, kw, stride, padding, dilation):
    n, c, h, w = x.shape
    x_nhwc = jnp.transpose(x, (0, 2, 3, 1))
    xp = jnp.pad(x_nhwc, ((0, 0), (padding, padding), (padding, padding), (0, 0)))
    oh = (h + 2 * padding - dilation * (kh - 1) - 1) // stride + 1
    ow = (w + 2 * padding - dilation * (kw - 1) - 1) // stride + 1
    taps = []
    for i in range(kh):
        for j in range(kw):
            hi, wj = i * dilation, j * dilation
            taps.append(xp[:, hi:hi + stride * oh:stride,
                           wj:wj + stride * ow:stride, :])      # (N, OH, OW, C)
    patches = jnp.stack(taps, axis=-1)                           # (N, OH, OW, C, KH*KW)
    patches = patches.reshape(n * oh * ow, c * kh * kw)          # pure reshape
    return patches, oh, ow


def lora_conv2d(x, weight, bias, lora_A, lora_B, *, stride=1, padding=0,
                dilation=1, lora_scaling=1.0, tile_m=None, tile_k=None,
                compute_dtype=jnp.bfloat16, out_dtype=None,
                channels_last_output=False):
    """Forward of LoRAConv2d (groups=1).

    x:       (N, C, H, W)          NCHW
    weight:  (out_c, C, KH, KW)
    bias:    (out_c,)
    lora_A:  (rank, C*KH*KW)
    lora_B:  (out_c, rank)
    returns  (N, out_c, OH, OW)    (or NHWC if channels_last_output=True)
    """
    n, c, h, w = x.shape
    out_c, c_w, kh, kw = weight.shape
    assert c_w == c, "groups != 1 is not supported"   # TODO(synk): grouped conv
    k = c * kh * kw
    if out_dtype is None:
        out_dtype = x.dtype
    csize = jnp.dtype(compute_dtype).itemsize
    osize = jnp.dtype(out_dtype).itemsize

    # ---- lane-dense output columns -----------------------------------------
    out_cp = _round_up(out_c, 128)
    if out_cp % 256 and out_c >= 0.85 * _round_up(out_c, 256):
        out_cp = _round_up(out_c, 256)        # fill the 256-wide MXU (v6e/v7x)

    # ---- K (contraction) padding & tiling -----------------------------------
    k_align = 128 if k > 1024 else (16 if csize < 4 else 8)
    k_pad = _round_up(k, k_align)
    if tile_k is None:
        tile_k = k_pad if k_pad <= 2048 else 1024
    tile_k = min(int(tile_k), k_pad)
    if tile_k < k_pad:
        tile_k = _round_up(tile_k, 128)       # lane constraint on patches block
        k_pad = _round_up(k_pad, tile_k)
    num_k = k_pad // tile_k

    # ---- LoRA fusion, ONCE, in plain jnp (review: one-shot, mem-bound) ------
    lora = (lora_scaling * lora_B.astype(jnp.float32)) @ lora_A.astype(jnp.float32)
    w_adj_T = (weight.reshape(out_c, k).astype(jnp.float32) + lora).T   # (K, out_c)
    w_adj_T = jnp.pad(w_adj_T, ((0, k_pad - k), (0, out_cp - out_c))
                      ).astype(compute_dtype)                           # (k_pad, out_cp)
    bias2d = jnp.pad(bias.astype(jnp.float32),
                     (0, out_cp - out_c)).reshape(1, out_cp)

    # ---- patches (ragged M: no full-matrix pad copy along M) ----------------
    patches, oh, ow = _im2col_patches(x, kh, kw, stride, padding, dilation)
    if k_pad != k:
        patches = jnp.pad(patches, ((0, 0), (0, k_pad - k)))   # zero cols: inert
    patches = patches.astype(compute_dtype)
    m = n * oh * ow

    # ---- tile_m from the per-generation VMEM budget -------------------------
    budget = _vmem_budget_bytes()
    patch_bufs = 3 if out_cp <= 256 else 2     # deeper pipeline when DMA-bound
    w_bufs = 1 if num_k == 1 else 2
    fixed = w_bufs * tile_k * out_cp * csize + out_cp * 4           # weight + bias
    per_row = patch_bufs * tile_k * csize + 2 * out_cp * osize + out_cp * 4  # + acc
    if tile_m is None:
        tile_m = max((budget - fixed - (2 << 20)) // per_row, 64)
    tile_m = int(min(tile_m, 2048))            # diminishing returns past ~2k rows
    if m >= 16:                                # keep >=2 M steps for megacore (v7x)
        tile_m = min(tile_m, _round_up(pl.cdiv(m, 2), 8))
    tile_m = min(tile_m, _round_up(m, 8))
    tile_m = max(8, (tile_m // 8) * 8)
    num_m = pl.cdiv(m, tile_m)   # ragged last block: OOB reads unused, writes clipped

    def _run(use_buffer_hints):
        def bs(shape, idx, bufs=None):
            if use_buffer_hints and bufs is not None:
                return pl.BlockSpec(shape, idx, pipeline_mode=pl.Buffered(bufs))
            return pl.BlockSpec(shape, idx)

        if num_k == 1:
            w_spec = bs((tile_k, out_cp), lambda i, kk: (0, 0), 1)   # invariant
        else:
            w_spec = bs((tile_k, out_cp), lambda i, kk: (kk, 0))
        in_specs = [
            bs((tile_m, tile_k), lambda i, kk: (i, kk), patch_bufs),
            w_spec,
            bs((1, out_cp), lambda i, kk: (0, 0), 1),                # invariant bias
        ]
        return pl.pallas_call(
            _conv_matmul_kernel,
            out_shape=jax.ShapeDtypeStruct((m, out_cp), out_dtype),
            grid_spec=pltpu.PrefetchScalarGridSpec(
                num_scalar_prefetch=0,
                grid=(num_m, num_k),                 # K (reduction) innermost
                in_specs=in_specs,
                out_specs=pl.BlockSpec((tile_m, out_cp), lambda i, kk: (i, 0)),
                scratch_shapes=[pltpu.VMEM((tile_m, out_cp), jnp.float32)],
            ),
            compiler_params=pltpu.CompilerParams(
                dimension_semantics=("parallel", "arbitrary"),  # M sharded on v7x
                vmem_limit_bytes=int(budget),
                allow_input_fusion=[True, False, False],        # fuse patch producer
            ),
        )(patches, w_adj_T, bias2d)

    try:
        out_flat = _run(True)
    except Exception:
        # pl.Buffered pipeline hints not supported on this jax build; fall back
        # to default double buffering (correctness unaffected, only VMEM headroom).
        out_flat = _run(False)

    out_nhwc = out_flat[:, :out_c].reshape(n, oh, ow, out_c)
    if channels_last_output:
        return out_nhwc            # skip the extra full-output HBM round trip
    # NOTE: this transpose costs one extra read+write of the whole output;
    # prefer channels_last_output=True when chaining layers.
    return jnp.transpose(out_nhwc, (0, 3, 1, 2))


# -----------------------------------------------------------------------------
# Pure-JAX reference (same math via lax.conv_general_dilated) for verification.
# -----------------------------------------------------------------------------
def lora_conv2d_ref(x, weight, bias, lora_A, lora_B, *, stride, padding,
                    dilation, lora_scaling):
    out_c = weight.shape[0]
    adj = (lora_B @ lora_A).reshape(weight.shape)
    w_adj = weight + lora_scaling * adj
    y = lax.conv_general_dilated(
        x, w_adj,
        window_strides=(stride, stride),
        padding=[(padding, padding), (padding, padding)],
        rhs_dilation=(dilation, dilation),
        dimension_numbers=("NCHW", "OIHW", "NCHW"),
    )
    return y + bias.reshape(1, out_c, 1, 1)


if __name__ == "__main__":
    key = jax.random.PRNGKey(0)
    k1, k2, k3, k4, k5 = jax.random.split(key, 5)

    # Small config consistent with LoRAConv2d __init__ defaults (groups=1).
    N, C, H, W = 2, 4, 16, 16
    out_c, kh, kw = 8, 3, 3
    stride, padding, dilation = 1, 1, 1
    rank = 4
    lora_scaling = 1.0

    x = jax.random.normal(k1, (N, C, H, W), dtype=jnp.float32)
    weight = jax.random.normal(k2, (out_c, C, kh, kw), dtype=jnp.float32) * 0.1
    bias = jax.random.normal(k3, (out_c,), dtype=jnp.float32) * 0.1
    lora_A = jax.random.normal(k4, (rank, C * kh * kw), dtype=jnp.float32) * 0.02
    # Module inits lora_B to zeros; use small nonzero values so the LoRA path
    # is actually exercised.
    lora_B = jax.random.normal(k5, (out_c, rank), dtype=jnp.float32) * 0.02

    run = functools.partial(lora_conv2d, stride=stride, padding=padding,
                            dilation=dilation, lora_scaling=lora_scaling)
    ref = lora_conv2d_ref(x, weight, bias, lora_A, lora_B,
                          stride=stride, padding=padding, dilation=dilation,
                          lora_scaling=lora_scaling)

    # Default path: bf16 compute (f32 accumulation), f32 output.
    out = jax.block_until_ready(run(x, weight, bias, lora_A, lora_B))
    assert out.shape == (N, out_c, H, W), out.shape
    assert out.dtype == x.dtype, out.dtype
    assert jnp.allclose(out, ref, atol=5e-2, rtol=5e-2), \
        float(jnp.max(jnp.abs(out - ref)))

    # Exact path: f32 compute, tight tolerance.
    out_f32 = jax.block_until_ready(
        run(x, weight, bias, lora_A, lora_B, compute_dtype=jnp.float32))
    assert jnp.allclose(out_f32, ref, atol=1e-4, rtol=1e-4), \
        float(jnp.max(jnp.abs(out_f32 - ref)))

    print("KERNEL_OK")
</pallas_src>

<mosaic_0001>
module attributes {stable_mosaic.version = 11 : i64} {
  func.func @_conv_matmul_kernel(%arg0: i32, %arg1: i32, %arg2: memref<256x48xbf16, #tpu.memory_space<vmem>>, %arg3: memref<48x128xbf16, #tpu.memory_space<vmem>>, %arg4: memref<1x128xf32, #tpu.memory_space<vmem>>, %arg5: memref<256x128xf32, #tpu.memory_space<vmem>>, %arg6: memref<256x128xf32, #tpu.memory_space<vmem>>) attributes {dimension_semantics = [#tpu.dimension_semantics<parallel>, #tpu.dimension_semantics<arbitrary>], iteration_bounds = array<i64: 2, 1>, scalar_prefetch = 0 : i64, scratch_operands = 1 : i64, tpu.core_type = #tpu.core_type<tc>, window_params = [{transform_indices = @transform_0, window_bounds = array<i64: 256, 48>}, {pipeline_mode = #tpu.pipeline_mode<synchronous>, transform_indices = @transform_1, window_bounds = array<i64: 48, 128>}, {pipeline_mode = #tpu.pipeline_mode<synchronous>, transform_indices = @transform_2, window_bounds = array<i64: 1, 128>}, {transform_indices = @transform_3, window_bounds = array<i64: 256, 128>}]} {
    %c0_i32 = arith.constant 0 : i32
    %0 = arith.cmpi eq, %arg1, %c0_i32 : i32
    %1 = arith.extui %0 : i1 to i32
    %c0_i32_0 = arith.constant 0 : i32
    %2 = arith.cmpi ne, %1, %c0_i32_0 : i32
    scf.if %2 {
      %cst_10 = arith.constant 0.000000e+00 : f32
      %12 = vector.broadcast %cst_10 : f32 to vector<256x128xf32>
      %c0_11 = arith.constant 0 : index
      %c0_12 = arith.constant 0 : index
      %13 = vector.load %arg6[%c0_11, %c0_12] : memref<256x128xf32, #tpu.memory_space<vmem>>, vector<256x128xf32>
      tpu.vector_store %arg6[%c0_11, %c0_12], %12 {strides = array<i32>} : memref<256x128xf32, #tpu.memory_space<vmem>>, vector<256x128xf32>,
    } else {
    }
    %c0 = arith.constant 0 : index
    %c0_1 = arith.constant 0 : index
    %3 = vector.load %arg6[%c0, %c0_1] : memref<256x128xf32, #tpu.memory_space<vmem>>, vector<256x128xf32>
    %c0_2 = arith.constant 0 : index
    %c0_3 = arith.constant 0 : index
    %4 = vector.load %arg2[%c0_2, %c0_3] : memref<256x48xbf16, #tpu.memory_space<vmem>>, vector<256x48xbf16>
    %c0_4 = arith.constant 0 : index
    %c0_5 = arith.constant 0 : index
    %5 = vector.load %arg3[%c0_4, %c0_5] : memref<48x128xbf16, #tpu.memory_space<vmem>>, vector<48x128xbf16>
    %cst = arith.constant dense<0.000000e+00> : vector<256x128xf32>
    %6 = tpu.matmul %4, %5, %cst {dimension_numbers = #tpu.dot_dimension_numbers<[1], [0], [0], [1], [0, 0, 1, 1], [], []>} : vector<256x48xbf16>, vector<48x128xbf16>, vector<256x128xf32> -> vector<256x128xf32>
    %7 = arith.addf %3, %6 : vector<256x128xf32>
    %c0_6 = arith.constant 0 : index
    %c0_7 = arith.constant 0 : index
    %8 = vector.load %arg6[%c0_6, %c0_7] : memref<256x128xf32, #tpu.memory_space<vmem>>, vector<256x128xf32>
    tpu.vector_store %arg6[%c0_6, %c0_7], %7 {strides = array<i32>} : memref<256x128xf32, #tpu.memory_space<vmem>>, vector<256x128xf32>,
    %c0_i32_8 = arith.constant 0 : i32
    %9 = arith.cmpi eq, %arg1, %c0_i32_8 : i32
    %10 = arith.extui %9 : i1 to i32
    %c0_i32_9 = arith.constant 0 : i32
    %11 = arith.cmpi ne, %10, %c0_i32_9 : i32
    scf.if %11 {
      %c0_10 = arith.constant 0 : index
      %c0_11 = arith.constant 0 : index
      %12 = vector.load %arg6[%c0_10, %c0_11] : memref<256x128xf32, #tpu.memory_space<vmem>>, vector<256x128xf32>
      %c0_12 = arith.constant 0 : index
      %c0_13 = arith.constant 0 : index
      %13 = vector.load %arg4[%c0_12, %c0_13] : memref<1x128xf32, #tpu.memory_space<vmem>>, vector<1x128xf32>
      %14 = vector.broadcast %13 : vector<1x128xf32> to vector<256x128xf32>
      %15 = arith.addf %12, %14 : vector<256x128xf32>
      %c0_14 = arith.constant 0 : index
      %c0_15 = arith.constant 0 : index
      %16 = vector.load %arg5[%c0_14, %c0_15] : memref<256x128xf32, #tpu.memory_space<vmem>>, vector<256x128xf32>
      tpu.vector_store %arg5[%c0_14, %c0_15], %15 {strides = array<i32>} : memref<256x128xf32, #tpu.memory_space<vmem>>, vector<256x128xf32>,
    } else {
    }
    return
  }
  func.func @transform_0(%arg0: i32, %arg1: i32) -> (i32, i32) {
    %c0_i32 = arith.constant 0 : i32
    return %arg0, %arg1 : i32, i32
  }
  func.func @transform_1(%arg0: i32, %arg1: i32) -> (i32, i32) {
    %c0_i32 = arith.constant 0 : i32
    %c0_i32_0 = arith.constant 0 : i32
    %c0_i32_1 = arith.constant 0 : i32
    return %c0_i32, %c0_i32_0 : i32, i32
  }
  func.func @transform_2(%arg0: i32, %arg1: i32) -> (i32, i32) {
    %c0_i32 = arith.constant 0 : i32
    %c0_i32_0 = arith.constant 0 : i32
    %c0_i32_1 = arith.constant 0 : i32
    return %c0_i32, %c0_i32_0 : i32, i32
  }
  func.func @transform_3(%arg0: i32, %arg1: i32) -> (i32, i32) {
    %c0_i32 = arith.constant 0 : i32
    %c0_i32_0 = arith.constant 0 : i32
    return %arg0, %c0_i32 : i32, i32
  }
}

</mosaic_0001>

<llo_original>
// kernel: tpu_custom_call.1
$region0: #{tpu_custom_call.1}
  #allocation0 [shape = 'u32[]', space=smem, size = 0x4, offset = 0x4, fixed_abs, tag = 'smem constant byte address 0x4 - core index']
  #allocation1 [shape = 'u32[72,128]{1,0:T(1,128)}', space=vmem, size = 0x9000, scoped, tag = 'internal scratch']
  #allocation2 [shape = 'f32[256,128]{1,0:T(8,128)}', space=vmem, size = 0x20000, scoped, tag = 'scratch operand']
  %s0 = inlined_call_operand.vmem [shape: bf16[512,48], index: 0, kind: input, shape index: {}]
  %s1 = inlined_call_operand.vmem [shape: bf16[48,128], index: 1, kind: input, shape index: {}]
  %s2 = inlined_call_operand.vmem [shape: f32[1,128], index: 2, kind: input, shape index: {}]
  %s3 = inlined_call_operand.hbm [shape: f32[512,128], index: 3, kind: output, shape index: {}]
  %s4 = sld [smem:[#allocation0]]
  $region53: #{tpu_custom_call.1} parent=0
    _
  %s6 = ssub.s32 1, %s4
  %s7 = scalar_select 0, %s6, %s4
  $region1: #{tpu_custom_call.1} parent=0
    #allocation3 [shape = 'u8[262144]{0}', space=vmem, size = 0x40000, scoped, tag = 'output window, operand 0']
    #allocation4 [shape = 's32[2]{0}', space=sflag, size = 0x8, scoped, tag = 'scoped memory for tpu_custom_call.1']
    %8 = vsyncpa [#allocation4], 0
    %s9 = scalar_lea.sflag [#allocation4], 1
    %10 = vsyncpa %s9, 0
    loop: start=0, step=1, limit=4
    $region2: #{tpu_custom_call.1} parent=1 // loop_pre_header
      _
    $region3: #{tpu_custom_call.1} parent=1 // loop_header
      %s12 = sphi 0, %s16
      %p13 = scmp.ge.s32.totalorder %s12, 4
      %s19 = sphi 0, %s31
      %s20 = sphi 0, %s27
      %s21 = sphi 0, %s19
      %s22 = sphi 0, %s20
      %s23 = sphi 0, %s21
      %s24 = sphi 0, %s22
      %s36 = sphi 0, %s38
      %s39 = sphi 0, %s36
      %s40 = sphi 0, %s39
      %s56 = sphi 0, %s40
      %s60 = sphi 0, %s60
      %s62 = sphi 0, %s60
      %s63 = sphi 0, %s62
      %s77 = sphi 0, %s63
      %s81 = sphi 0, %s81
      %s83 = sphi 0, %s81
      %s84 = sphi 0, %s83
      %s98 = sphi 0, %s84
      %s104 = sphi 0, %s106
      %s107 = sphi 0, %s104
      %s108 = sphi 0, %s107
      %s124 = sphi 0, %s108
    $region4: #{tpu_custom_call.1} parent=1 // loop_header_branch
      %15 = sbr.rel (%p13) target = $region8
    $region5: #{tpu_custom_call.1} parent=1 // loop_body
      %s17 = ssub.s32 %s12, 1
      %s18 = ssub.s32 %s12, 2
      %s25 = sadd.s32 1, %s20
      %p26 = scmp.ge.s32.totalorder %s25, 1
      %s27 = scalar_select %p26, 0, %s25
      %s28 = sadd.s32 1, %s19
      %s29 = scalar_select %p26, %s28, %s19
      %p30 = scmp.ge.s32.totalorder %s29, 2
      %s31 = scalar_select %p30, 0, %s29
      %s32 = ssub.s32 %s19, %s31
      %s33 = ssub.s32 %s20, %s27
      %s34 = sor.u32 %s32, %s33
      %p35 = scmp.eq.s32.totalorder %s34, 0
      %s37 = sadd.s32 %s36, 1
      %s38 = scalar_select %p35, %s36, %s37
      %p41 = pneg %p35
      %p42 = scmp.eq.s32.totalorder %s12, 1
      %p43 = por %p41, %p42
      %p44 = scmp.ne.s32.totalorder %s36, %s39
      %p45 = scmp.eq.s32.totalorder %s12, 0
      %p46 = por %p44, %p45
      %p47 = scmp.ne.s32.totalorder %s36, %s39
      %p48 = scmp.eq.s32.totalorder %s17, 1
      %p49 = por %p47, %p48
      %p50 = scmp.ne.s32.totalorder %s39, %s40
      %p51 = scmp.eq.s32.totalorder %s17, 0
      %p52 = por %p50, %p51
      %p53 = scmp.ne.s32.totalorder %s39, %s40
      %p54 = scmp.eq.s32.totalorder %s18, 1
      %p55 = por %p53, %p54
      %p57 = scmp.ne.s32.totalorder %s40, %s56
      %p58 = scmp.eq.s32.totalorder %s18, 0
      %p59 = por %p57, %p58
      %s61 = sadd.s32 %s60, 1
      %p64 = scmp.eq.s32.totalorder %s12, 1
      %p65 = scmp.ne.s32.totalorder %s60, %s62
      %p66 = scmp.eq.s32.totalorder %s12, 0
      %p67 = por %p65, %p66
      %p68 = scmp.ne.s32.totalorder %s60, %s62
      %p69 = scmp.eq.s32.totalorder %s17, 1
      %p70 = por %p68, %p69
      %p71 = scmp.ne.s32.totalorder %s62, %s63
      %p72 = scmp.eq.s32.totalorder %s17, 0
      %p73 = por %p71, %p72
      %p74 = scmp.ne.s32.totalorder %s62, %s63
      %p75 = scmp.eq.s32.totalorder %s18, 1
      %p76 = por %p74, %p75
      %p78 = scmp.ne.s32.totalorder %s63, %s77
      %p79 = scmp.eq.s32.totalorder %s18, 0
      %p80 = por %p78, %p79
      %s82 = sadd.s32 %s81, 1
      %p85 = scmp.eq.s32.totalorder %s12, 1
      %p86 = scmp.ne.s32.totalorder %s81, %s83
      %p87 = scmp.eq.s32.totalorder %s12, 0
      %p88 = por %p86, %p87
      %p89 = scmp.ne.s32.totalorder %s81, %s83
      %p90 = scmp.eq.s32.totalorder %s17, 1
      %p91 = por %p89, %p90
      %p92 = scmp.ne.s32.totalorder %s83, %s84
      %p93 = scmp.eq.s32.totalorder %s17, 0
      %p94 = por %p92, %p93
      %p95 = scmp.ne.s32.totalorder %s83, %s84
      %p96 = scmp.eq.s32.totalorder %s18, 1
      %p97 = por %p95, %p96
      %p99 = scmp.ne.s32.totalorder %s84, %s98
      %p100 = scmp.eq.s32.totalorder %s18, 0
      %p101 = por %p99, %p100
      %s102 = ssub.s32 %s19, %s31
      %p103 = scmp.eq.s32.totalorder %s102, 0
      %s105 = sadd.s32 %s104, 1
      %s106 = scalar_select %p103, %s104, %s105
      %p109 = pneg %p103
      %p110 = scmp.eq.s32.totalorder %s12, 1
      %p111 = por %p109, %p110
      %p112 = scmp.ne.s32.totalorder %s104, %s107
      %p113 = scmp.eq.s32.totalorder %s12, 0
      %p114 = por %p112, %p113
      %p115 = scmp.ne.s32.totalorder %s104, %s107
      %p116 = scmp.eq.s32.totalorder %s17, 1
      %p117 = por %p115, %p116
      %p118 = scmp.ne.s32.totalorder %s107, %s108
      %p119 = scmp.eq.s32.totalorder %s17, 0
      %p120 = por %p118, %p119
      %p121 = scmp.ne.s32.totalorder %s107, %s108
      %p122 = scmp.eq.s32.totalorder %s18, 1
      %p123 = por %p121, %p122
      %p125 = scmp.ne.s32.totalorder %s108, %s124
      %p126 = scmp.eq.s32.totalorder %s18, 0
      %p127 = por %p125, %p126
      %p128 = scmp.le.s32.totalorder 1, %s12
      %p129 = scmp.lt.s32.totalorder %s12, 3
      %p130 = pnand %p128, %p129
      %p131 = pneg %p130
      // Predicated region
      $region9: #{tpu_custom_call.1} parent=5 // pred_check
        _
      $region10: #{tpu_custom_call.1} parent=5 // pred_check_branch
        %133 = sbr.rel (%p130) target = $region12
      $region11: #{tpu_custom_call.1} parent=5 // pred_region
        %s134 = ssub.s32 %s12, 1
        // Predicated region
        $region13: #{tpu_custom_call.1} parent=11 // pred_check
          %p135 = pneg %p73
        $region14: #{tpu_custom_call.1} parent=11 // pred_check_branch
          %137 = sbr.rel (%p135) target = $region16
        $region15: #{tpu_custom_call.1} parent=11 // pred_region
          _
        $region16: #{tpu_custom_call.1} parent=11 // pred_fallthru
          _
        // Predicated region
        $region17: #{tpu_custom_call.1} parent=11 // pred_check
          %p138 = pneg %p94
        $region18: #{tpu_custom_call.1} parent=11 // pred_check_branch
          %140 = sbr.rel (%p138) target = $region20
        $region19: #{tpu_custom_call.1} parent=11 // pred_region
          _
        $region20: #{tpu_custom_call.1} parent=11 // pred_fallthru
          _
      $region12: #{tpu_custom_call.1} parent=5 // pred_fallthru
        _
      %p141 = scmp.lt.s32.totalorder %s12, 2
      // Predicated region
      $region21: #{tpu_custom_call.1} parent=5 // pred_check
        %p142 = pneg %p141
      $region22: #{tpu_custom_call.1} parent=5 // pred_check_branch
        %144 = sbr.rel (%p142) target = $region24
      $region23: #{tpu_custom_call.1} parent=5 // pred_region
        // Predicated region
        $region25: #{tpu_custom_call.1} parent=23 // pred_check
          %p145 = pneg %p46
        $region26: #{tpu_custom_call.1} parent=23 // pred_check_branch
          %147 = sbr.rel (%p145) target = $region28
        $region27: #{tpu_custom_call.1} parent=23 // pred_region
          %s148 = smul.u32 32, %s19
          %p149 = scmp.lt.s32.totalorder %s148, 63
          %s150 = scalar_select %p149, %s148, 63
          %p151 = scmp.lt.s32.totalorder %s20, 0
          %s152 = scalar_select %p151, %s20, 0
          %s153 = sadd.s32 %s152, %s150
          %s154 = smul.addr %s153, 4
          %s155 = scalar_lea.vmem %s0, %s154
          %s156 = smul.u32 32, %s19
        $region28: #{tpu_custom_call.1} parent=23 // pred_fallthru
          _
      $region24: #{tpu_custom_call.1} parent=5 // pred_fallthru
        _
      %p157 = scmp.le.s32.totalorder 1, %s12
      %p158 = scmp.lt.s32.totalorder %s12, 3
      %p159 = pnand %p157, %p158
      %p160 = pneg %p159
      // Predicated region
      $region29: #{tpu_custom_call.1} parent=5 // pred_check
        _
      $region30: #{tpu_custom_call.1} parent=5 // pred_check_branch
        %162 = sbr.rel (%p159) target = $region32
      $region31: #{tpu_custom_call.1} parent=5 // pred_region
        %s163 = ssub.s32 %s12, 1
        %s164 = smul.u32 32, %s21
        %p165 = scmp.lt.s32.totalorder %s164, 63
        %s166 = scalar_select %p165, %s164, 63
        %p167 = scmp.lt.s32.totalorder %s22, 0
        %s168 = scalar_select %p167, %s22, 0
        %s169 = sadd.s32 %s168, %s166
        %s170 = smul.addr %s169, 4
        %s171 = scalar_lea.vmem %s0, %s170
        %p172 = pneg %p52
        %p173 = pneg %p49
        %p174 = pneg %p73
        %p175 = pneg %p70
        %p176 = pneg %p94
        %p177 = pneg %p91
        %p178 = pneg %p120
        %p179 = pneg %p117
        %s180 = sand.u32 %s107, 1
        %s181 = scalar_lea.sflag [#allocation4], %s180
        %s182 = sand.u32 %s107, 1
        %s183 = smul.addr %s182, 256
        %s184 = scalar_lea.vmem [#allocation3], %s183
        %s185 = smul.u32 32, %s21
        %p186 = scmp.lt.s32.totalorder %s185, 63
        %s187 = scalar_select %p186, %s185, 63
        %p188 = scmp.lt.s32.totalorder %s22, 0
        %s189 = scalar_select %p188, %s22, 0
        %s190 = sadd.s32 %s189, %s187
        %s191 = smul.addr %s190, 4
        %s192 = scalar_lea.vmem %s0, %s191
        %s193 = smul.u32 32, %s21
        %s194 = smul.u32 32, %s21
        %p196 = scmp.eq.s32.totalorder %s22, 0
        // Predicated region
        $region33: #{tpu_custom_call.1} parent=31 // pred_check
          %p197 = pneg %p196
        $region34: #{tpu_custom_call.1} parent=31 // pred_check_branch
          %199 = sbr.rel (%p197) target = $region36
        $region35: #{tpu_custom_call.1} parent=31 // pred_region
          %200 = vst [vmem:[#allocation2] sm:$0xff] 0.0
          %201 = vst [vmem:[#allocation2 + $0x8] sm:$0xff] 0.0
          %202 = vst [vmem:[#allocation2 + $0x10] sm:$0xff] 0.0
          %203 = vst [vmem:[#allocation2 + $0x18] sm:$0xff] 0.0
          %204 = vst [vmem:[#allocation2 + $0x20] sm:$0xff] 0.0
          %205 = vst [vmem:[#allocation2 + $0x28] sm:$0xff] 0.0
          %206 = vst [vmem:[#allocation2 + $0x30] sm:$0xff] 0.0
          %207 = vst [vmem:[#allocation2 + $0x38] sm:$0xff] 0.0
          %208 = vst [vmem:[#allocation2 + $0x40] sm:$0xff] 0.0
          %209 = vst [vmem:[#allocation2 + $0x48] sm:$0xff] 0.0
          %210 = vst [vmem:[#allocation2 + $0x50] sm:$0xff] 0.0
          %211 = vst [vmem:[#allocation2 + $0x58] sm:$0xff] 0.0
          %212 = vst [vmem:[#allocation2 + $0x60] sm:$0xff] 0.0
          %213 = vst [vmem:[#allocation2 + $0x68] sm:$0xff] 0.0
          %214 = vst [vmem:[#allocation2 + $0x70] sm:$0xff] 0.0
          %215 = vst [vmem:[#allocation2 + $0x78] sm:$0xff] 0.0
          %216 = vst [vmem:[#allocation2 + $0x80] sm:$0xff] 0.0
          %217 = vst [vmem:[#allocation2 + $0x88] sm:$0xff] 0.0
          %218 = vst [vmem:[#allocation2 + $0x90] sm:$0xff] 0.0
          %219 = vst [vmem:[#allocation2 + $0x98] sm:$0xff] 0.0
          %220 = vst [vmem:[#allocation2 + $0xa0] sm:$0xff] 0.0
          %221 = vst [vmem:[#allocation2 + $0xa8] sm:$0xff] 0.0
          %222 = vst [vmem:[#allocation2 + $0xb0] sm:$0xff] 0.0
          %223 = vst [vmem:[#allocation2 + $0xb8] sm:$0xff] 0.0
          %224 = vst [vmem:[#allocation2 + $0xc0] sm:$0xff] 0.0
          %225 = vst [vmem:[#allocation2 + $0xc8] sm:$0xff] 0.0
          %226 = vst [vmem:[#allocation2 + $0xd0] sm:$0xff] 0.0
          %227 = vst [vmem:[#allocation2 + $0xd8] sm:$0xff] 0.0
          %228 = vst [vmem:[#allocation2 + $0xe0] sm:$0xff] 0.0
          %229 = vst [vmem:[#allocation2 + $0xe8] sm:$0xff] 0.0
          %230 = vst [vmem:[#allocation2 + $0xf0] sm:$0xff] 0.0
          %231 = vst [vmem:[#allocation2 + $0xf8] sm:$0xff] 0.0
        $region36: #{tpu_custom_call.1} parent=31 // pred_fallthru
          _
        %v232 = vld [vmem:[#allocation2] sm:$0xff]
        %v233 = vld [vmem:[#allocation2 + $0x8] sm:$0xff]
        %v234 = vld [vmem:[#allocation2 + $0x10] sm:$0xff]
        %v235 = vld [vmem:[#allocation2 + $0x18] sm:$0xff]
        %v236 = vld [vmem:[#allocation2 + $0x20] sm:$0xff]
        %v237 = vld [vmem:[#allocation2 + $0x28] sm:$0xff]
        %v238 = vld [vmem:[#allocation2 + $0x30] sm:$0xff]
        %v239 = vld [vmem:[#allocation2 + $0x38] sm:$0xff]
        %v240 = vld [vmem:[#allocation2 + $0x40] sm:$0xff]
        %v241 = vld [vmem:[#allocation2 + $0x48] sm:$0xff]
        %v242 = vld [vmem:[#allocation2 + $0x50] sm:$0xff]
        %v243 = vld [vmem:[#allocation2 + $0x58] sm:$0xff]
        %v244 = vld [vmem:[#allocation2 + $0x60] sm:$0xff]
        %v245 = vld [vmem:[#allocation2 + $0x68] sm:$0xff]
        %v246 = vld [vmem:[#allocation2 + $0x70] sm:$0xff]
        %v247 = vld [vmem:[#allocation2 + $0x78] sm:$0xff]
        %v248 = vld [vmem:[#allocation2 + $0x80] sm:$0xff]
        %v249 = vld [vmem:[#allocation2 + $0x88] sm:$0xff]
        %v250 = vld [vmem:[#allocation2 + $0x90] sm:$0xff]
        %v251 = vld [vmem:[#allocation2 + $0x98] sm:$0xff]
        %v252 = vld [vmem:[#allocation2 + $0xa0] sm:$0xff]
        %v253 = vld [vmem:[#allocation2 + $0xa8] sm:$0xff]
        %v254 = vld [vmem:[#allocation2 + $0xb0] sm:$0xff]
        %v255 = vld [vmem:[#allocation2 + $0xb8] sm:$0xff]
        %v256 = vld [vmem:[#allocation2 + $0xc0] sm:$0xff]
        %v257 = vld [vmem:[#allocation2 + $0xc8] sm:$0xff]
        %v258 = vld [vmem:[#allocation2 + $0xd0] sm:$0xff]
        %v259 = vld [vmem:[#allocation2 + $0xd8] sm:$0xff]
        %v260 = vld [vmem:[#allocation2 + $0xe0] sm:$0xff]
        %v261 = vld [vmem:[#allocation2 + $0xe8] sm:$0xff]
        %v262 = vld [vmem:[#allocation2 + $0xf0] sm:$0xff]
        %v263 = vld [vmem:[#allocation2 + $0xf8] sm:$0xff]
        %v264 = vld [vmem:[%s192] sm:$0xf]
        %v265 = vld [vmem:[%s192 + $0x4] sm:$0xf]
        %v266 = vld [vmem:[%s192 + $0x8] sm:$0xf]
        %v267 = vld [vmem:[%s192 + $0xc] sm:$0xf]
        %v268 = vld [vmem:[%s192 + $0x10] sm:$0xf]
        %v269 = vld [vmem:[%s192 + $0x14] sm:$0xf]
        %v270 = vld [vmem:[%s192 + $0x18] sm:$0xf]
        %v271 = vld [vmem:[%s192 + $0x1c] sm:$0xf]
        %v272 = vld [vmem:[%s192 + $0x20] sm:$0xf]
        %v273 = vld [vmem:[%s192 + $0x24] sm:$0xf]
        %v274 = vld [vmem:[%s192 + $0x28] sm:$0xf]
        %v275 = vld [vmem:[%s192 + $0x2c] sm:$0xf]
        %v276 = vld [vmem:[%s192 + $0x30] sm:$0xf]
        %v277 = vld [vmem:[%s192 + $0x34] sm:$0xf]
        %v278 = vld [vmem:[%s192 + $0x38] sm:$0xf]
        %v279 = vld [vmem:[%s192 + $0x3c] sm:$0xf]
        %v280 = vld [vmem:[%s192 + $0x40] sm:$0xf]
        %v281 = vld [vmem:[%s192 + $0x44] sm:$0xf]
        %v282 = vld [vmem:[%s192 + $0x48] sm:$0xf]
        %v283 = vld [vmem:[%s192 + $0x4c] sm:$0xf]
        %v284 = vld [vmem:[%s192 + $0x50] sm:$0xf]
        %v285 = vld [vmem:[%s192 + $0x54] sm:$0xf]
        %v286 = vld [vmem:[%s192 + $0x58] sm:$0xf]
        %v287 = vld [vmem:[%s192 + $0x5c] sm:$0xf]
        %v288 = vld [vmem:[%s192 + $0x60] sm:$0xf]
        %v289 = vld [vmem:[%s192 + $0x64] sm:$0xf]
        %v290 = vld [vmem:[%s192 + $0x68] sm:$0xf]
        %v291 = vld [vmem:[%s192 + $0x6c] sm:$0xf]
        %v292 = vld [vmem:[%s192 + $0x70] sm:$0xf]
        %v293 = vld [vmem:[%s192 + $0x74] sm:$0xf]
        %v294 = vld [vmem:[%s192 + $0x78] sm:$0xf]
        %v295 = vld [vmem:[%s192 + $0x7c] sm:$0xf]
        %v296 = vld [vmem:[%s1] sm:$0xf]
        %v297 = vld [vmem:[%s1 + $0x4] sm:$0xf]
        %v298 = vld [vmem:[%s1 + $0x8] sm:$0xf]
        %v299 = vld [vmem:[%s1 + $0xc] sm:$0xf]
        %v300 = vld [vmem:[%s1 + $0x10] sm:$0xf]
        %v301 = vld [vmem:[%s1 + $0x14] sm:$0xf]
        %v334 = vunpack.c.l.b16 %v264
        %v335 = vunpack.c.l.b16 %v265
        %v336 = vunpack.c.l.b16 %v266
        %v337 = vunpack.c.l.b16 %v267
        %v338 = vunpack.c.l.b16 %v268
        %v339 = vunpack.c.l.b16 %v269
        %v340 = vunpack.c.l.b16 %v270
        %v341 = vunpack.c.l.b16 %v271
        %v342 = vunpack.c.l.b16 %v272
        %v343 = vunpack.c.l.b16 %v273
        %v344 = vunpack.c.l.b16 %v274
        %v345 = vunpack.c.l.b16 %v275
        %v346 = vunpack.c.l.b16 %v276
        %v347 = vunpack.c.l.b16 %v277
        %v348 = vunpack.c.l.b16 %v278
        %v349 = vunpack.c.l.b16 %v279
        %v350 = vunpack.c.l.b16 %v280
        %v351 = vunpack.c.l.b16 %v281
        %v352 = vunpack.c.l.b16 %v282
        %v353 = vunpack.c.l.b16 %v283
        %v354 = vunpack.c.l.b16 %v284
        %v355 = vunpack.c.l.b16 %v285
        %v356 = vunpack.c.l.b16 %v286
        %v357 = vunpack.c.l.b16 %v287
        %v358 = vunpack.c.l.b16 %v288
        %v359 = vunpack.c.l.b16 %v289
        %v360 = vunpack.c.l.b16 %v290
        %v361 = vunpack.c.l.b16 %v291
        %v362 = vunpack.c.l.b16 %v292
        %v363 = vunpack.c.l.b16 %v293
        %v364 = vunpack.c.l.b16 %v294
        %v365 = vunpack.c.l.b16 %v295
        %v366 = vpack.c.b16 %v335, %v334
        %v367 = vpack.c.b16 %v337, %v336
        %v368 = vpack.c.b16 %v339, %v338
        %v369 = vpack.c.b16 %v341, %v340
        %v370 = vpack.c.b16 %v343, %v342
        %v371 = vpack.c.b16 %v345, %v344
        %v372 = vpack.c.b16 %v347, %v346
        %v373 = vpack.c.b16 %v349, %v348
        %v374 = vpack.c.b16 %v351, %v350
        %v375 = vpack.c.b16 %v353, %v352
        %v376 = vpack.c.b16 %v355, %v354
        %v377 = vpack.c.b16 %v357, %v356
        %v378 = vpack.c.b16 %v359, %v358
        %v379 = vpack.c.b16 %v361, %v360
        %v380 = vpack.c.b16 %v363, %v362
        %v381 = vpack.c.b16 %v365, %v364
        %v388 = vunpack.c.l.b16 %v296
        %v389 = vunpack.c.l.b16 %v297
        %v390 = vunpack.c.l.b16 %v298
        %v391 = vunpack.c.l.b16 %v299
        %v392 = vunpack.c.l.b16 %v300
        %v393 = vunpack.c.l.b16 %v301
        %v394 = vpack.c.b16 %v389, %v388
        %v395 = vpack.c.b16 %v391, %v390
        %v396 = vpack.c.b16 %v393, %v392
        %vm400 = vcmask 392192
        %v402 = vsel %vm400, %v366, 0
        %v405 = vsel %vm400, %v367, 0
        %v408 = vsel %vm400, %v368, 0
        %v411 = vsel %vm400, %v369, 0
        %v414 = vsel %vm400, %v370, 0
        %v417 = vsel %vm400, %v371, 0
        %v420 = vsel %vm400, %v372, 0
        %v423 = vsel %vm400, %v373, 0
        %v426 = vsel %vm400, %v374, 0
        %v429 = vsel %vm400, %v375, 0
        %v432 = vsel %vm400, %v376, 0
        %v435 = vsel %vm400, %v377, 0
        %v438 = vsel %vm400, %v378, 0
        %v441 = vsel %vm400, %v379, 0
        %v444 = vsel %vm400, %v380, 0
        %v447 = vsel %vm400, %v381, 0
        %449 = vmatpush.bf16.msra.mxu0 0
        %450 = vmatpush.bf16.msra.mxu0 0
        %451 = vmatpush.bf16.msra.mxu0 0
        %452 = vmatpush.bf16.msra.mxu0 0
        %453 = vmatpush.bf16.msra.mxu0 0
        %454 = vmatpush.bf16.msra.mxu0 %v396
        %455 = vmatpush.bf16.msra.mxu0 %v395
        %456 = vmatpush.bf16.msra.mxu0 %v394
        %457 = vmatmul.bf16.gmra.mxu0 %v402
        %v458 = vpop.f32.mrf.mxu0
        %v459 = vadd.f32 0.0, %v458
        %v460 = vpop.f32.mrf.mxu0
        %v461 = vadd.f32 0.0, %v460
        %462 = vmatmul.bf16.gmra.mxu0 %v405
        %v463 = vpop.f32.mrf.mxu0
        %v464 = vadd.f32 0.0, %v463
        %v465 = vpop.f32.mrf.mxu0
        %v466 = vadd.f32 0.0, %v465
        %467 = vmatmul.bf16.gmra.mxu0 %v408
        %v468 = vpop.f32.mrf.mxu0
        %v469 = vadd.f32 0.0, %v468
        %v470 = vpop.f32.mrf.mxu0
        %v471 = vadd.f32 0.0, %v470
        %472 = vmatmul.bf16.gmra.mxu0 %v411
        %v473 = vpop.f32.mrf.mxu0
        %v474 = vadd.f32 0.0, %v473
        %v475 = vpop.f32.mrf.mxu0
        %v476 = vadd.f32 0.0, %v475
        %477 = vmatmul.bf16.gmra.mxu0 %v414
        %v478 = vpop.f32.mrf.mxu0
        %v479 = vadd.f32 0.0, %v478
        %v480 = vpop.f32.mrf.mxu0
        %v481 = vadd.f32 0.0, %v480
        %482 = vmatmul.bf16.gmra.mxu0 %v417
        %v483 = vpop.f32.mrf.mxu0
        %v484 = vadd.f32 0.0, %v483
        %v485 = vpop.f32.mrf.mxu0
        %v486 = vadd.f32 0.0, %v485
        %487 = vmatmul.bf16.gmra.mxu0 %v420
        %v488 = vpop.f32.mrf.mxu0
        %v489 = vadd.f32 0.0, %v488
        %v490 = vpop.f32.mrf.mxu0
        %v491 = vadd.f32 0.0, %v490
        %492 = vmatmul.bf16.gmra.mxu0 %v423
        %v493 = vpop.f32.mrf.mxu0
        %v494 = vadd.f32 0.0, %v493
        %v495 = vpop.f32.mrf.mxu0
        %v496 = vadd.f32 0.0, %v495
        %497 = vmatmul.bf16.gmra.mxu0 %v426
        %v498 = vpop.f32.mrf.mxu0
        %v499 = vadd.f32 0.0, %v498
        %v500 = vpop.f32.mrf.mxu0
        %v501 = vadd.f32 0.0, %v500
        %502 = vmatmul.bf16.gmra.mxu0 %v429
        %v503 = vpop.f32.mrf.mxu0
        %v504 = vadd.f32 0.0, %v503
        %v505 = vpop.f32.mrf.mxu0
        %v506 = vadd.f32 0.0, %v505
        %507 = vmatmul.bf16.gmra.mxu0 %v432
        %v508 = vpop.f32.mrf.mxu0
        %v509 = vadd.f32 0.0, %v508
        %v510 = vpop.f32.mrf.mxu0
        %v511 = vadd.f32 0.0, %v510
        %512 = vmatmul.bf16.gmra.mxu0 %v435
        %v513 = vpop.f32.mrf.mxu0
        %v514 = vadd.f32 0.0, %v513
        %v515 = vpop.f32.mrf.mxu0
        %v516 = vadd.f32 0.0, %v515
        %517 = vmatmul.bf16.gmra.mxu0 %v438
        %v518 = vpop.f32.mrf.mxu0
        %v519 = vadd.f32 0.0, %v518
        %v520 = vpop.f32.mrf.mxu0
        %v521 = vadd.f32 0.0, %v520
        %522 = vmatmul.bf16.gmra.mxu0 %v441
        %v523 = vpop.f32.mrf.mxu0
        %v524 = vadd.f32 0.0, %v523
        %v525 = vpop.f32.mrf.mxu0
        %v526 = vadd.f32 0.0, %v525
        %527 = vmatmul.bf16.gmra.mxu0 %v444
        %v528 = vpop.f32.mrf.mxu0
        %v529 = vadd.f32 0.0, %v528
        %v530 = vpop.f32.mrf.mxu0
        %v531 = vadd.f32 0.0, %v530
        %532 = vmatmul.bf16.gmra.mxu0 %v447
        %v533 = vpop.f32.mrf.mxu0
        %v534 = vadd.f32 0.0, %v533
        %v535 = vpop.f32.mrf.mxu0
        %v536 = vadd.f32 0.0, %v535
        %537 = vdwg.mxu0
        %v538 = vadd.f32 %v232, %v459
        %v539 = vadd.f32 %v233, %v461
        %v540 = vadd.f32 %v234, %v464
        %v541 = vadd.f32 %v235, %v466
        %v542 = vadd.f32 %v236, %v469
        %v543 = vadd.f32 %v237, %v471
        %v544 = vadd.f32 %v238, %v474
        %v545 = vadd.f32 %v239, %v476
        %v546 = vadd.f32 %v240, %v479
        %v547 = vadd.f32 %v241, %v481
        %v548 = vadd.f32 %v242, %v484
        %v549 = vadd.f32 %v243, %v486
        %v550 = vadd.f32 %v244, %v489
        %v551 = vadd.f32 %v245, %v491
        %v552 = vadd.f32 %v246, %v494
        %v553 = vadd.f32 %v247, %v496
        %v554 = vadd.f32 %v248, %v499
        %v555 = vadd.f32 %v249, %v501
        %v556 = vadd.f32 %v250, %v504
        %v557 = vadd.f32 %v251, %v506
        %v558 = vadd.f32 %v252, %v509
        %v559 = vadd.f32 %v253, %v511
        %v560 = vadd.f32 %v254, %v514
        %v561 = vadd.f32 %v255, %v516
        %v562 = vadd.f32 %v256, %v519
        %v563 = vadd.f32 %v257, %v521
        %v564 = vadd.f32 %v258, %v524
        %v565 = vadd.f32 %v259, %v526
        %v566 = vadd.f32 %v260, %v529
        %v567 = vadd.f32 %v261, %v531
        %v568 = vadd.f32 %v262, %v534
        %v569 = vadd.f32 %v263, %v536
        %570 = vst [vmem:[#allocation2] sm:$0xff] %v538
        %571 = vst [vmem:[#allocation2 + $0x8] sm:$0xff] %v539
        %572 = vst [vmem:[#allocation2 + $0x10] sm:$0xff] %v540
        %573 = vst [vmem:[#allocation2 + $0x18] sm:$0xff] %v541
        %574 = vst [vmem:[#allocation2 + $0x20] sm:$0xff] %v542
        %575 = vst [vmem:[#allocation2 + $0x28] sm:$0xff] %v543
        %576 = vst [vmem:[#allocation2 + $0x30] sm:$0xff] %v544
        %577 = vst [vmem:[#allocation2 + $0x38] sm:$0xff] %v545
        %578 = vst [vmem:[#allocation2 + $0x40] sm:$0xff] %v546
        %579 = vst [vmem:[#allocation2 + $0x48] sm:$0xff] %v547
        %580 = vst [vmem:[#allocation2 + $0x50] sm:$0xff] %v548
        %581 = vst [vmem:[#allocation2 + $0x58] sm:$0xff] %v549
        %582 = vst [vmem:[#allocation2 + $0x60] sm:$0xff] %v550
        %583 = vst [vmem:[#allocation2 + $0x68] sm:$0xff] %v551
        %584 = vst [vmem:[#allocation2 + $0x70] sm:$0xff] %v552
        %585 = vst [vmem:[#allocation2 + $0x78] sm:$0xff] %v553
        %586 = vst [vmem:[#allocation2 + $0x80] sm:$0xff] %v554
        %587 = vst [vmem:[#allocation2 + $0x88] sm:$0xff] %v555
        %588 = vst [vmem:[#allocation2 + $0x90] sm:$0xff] %v556
        %589 = vst [vmem:[#allocation2 + $0x98] sm:$0xff] %v557
        %590 = vst [vmem:[#allocation2 + $0xa0] sm:$0xff] %v558
        %591 = vst [vmem:[#allocation2 + $0xa8] sm:$0xff] %v559
        %592 = vst [vmem:[#allocation2 + $0xb0] sm:$0xff] %v560
        %593 = vst [vmem:[#allocation2 + $0xb8] sm:$0xff] %v561
        %594 = vst [vmem:[#allocation2 + $0xc0] sm:$0xff] %v562
        %595 = vst [vmem:[#allocation2 + $0xc8] sm:$0xff] %v563
        %596 = vst [vmem:[#allocation2 + $0xd0] sm:$0xff] %v564
        %597 = vst [vmem:[#allocation2 + $0xd8] sm:$0xff] %v565
        %598 = vst [vmem:[#allocation2 + $0xe0] sm:$0xff] %v566
        %599 = vst [vmem:[#allocation2 + $0xe8] sm:$0xff] %v567
        %600 = vst [vmem:[#allocation2 + $0xf0] sm:$0xff] %v568
        %601 = vst [vmem:[#allocation2 + $0xf8] sm:$0xff] %v569
        // Predicated region
        $region37: #{tpu_custom_call.1} parent=31 // pred_check
          %p602 = pneg %p196
        $region38: #{tpu_custom_call.1} parent=31 // pred_check_branch
          %604 = sbr.rel (%p602) target = $region40
        $region39: #{tpu_custom_call.1} parent=31 // pred_region
          %v605 = vld [vmem:[#allocation2] sm:$0xff]
          %v606 = vld [vmem:[#allocation2 + $0x8] sm:$0xff]
          %v607 = vld [vmem:[#allocation2 + $0x10] sm:$0xff]
          %v608 = vld [vmem:[#allocation2 + $0x18] sm:$0xff]
          %v609 = vld [vmem:[#allocation2 + $0x20] sm:$0xff]
          %v610 = vld [vmem:[#allocation2 + $0x28] sm:$0xff]
          %v611 = vld [vmem:[#allocation2 + $0x30] sm:$0xff]
          %v612 = vld [vmem:[#allocation2 + $0x38] sm:$0xff]
          %v613 = vld [vmem:[#allocation2 + $0x40] sm:$0xff]
          %v614 = vld [vmem:[#allocation2 + $0x48] sm:$0xff]
          %v615 = vld [vmem:[#allocation2 + $0x50] sm:$0xff]
          %v616 = vld [vmem:[#allocation2 + $0x58] sm:$0xff]
          %v617 = vld [vmem:[#allocation2 + $0x60] sm:$0xff]
          %v618 = vld [vmem:[#allocation2 + $0x68] sm:$0xff]
          %v619 = vld [vmem:[#allocation2 + $0x70] sm:$0xff]
          %v620 = vld [vmem:[#allocation2 + $0x78] sm:$0xff]
          %v621 = vld [vmem:[#allocation2 + $0x80] sm:$0xff]
          %v622 = vld [vmem:[#allocation2 + $0x88] sm:$0xff]
          %v623 = vld [vmem:[#allocation2 + $0x90] sm:$0xff]
          %v624 = vld [vmem:[#allocation2 + $0x98] sm:$0xff]
          %v625 = vld [vmem:[#allocation2 + $0xa0] sm:$0xff]
          %v626 = vld [vmem:[#allocation2 + $0xa8] sm:$0xff]
          %v627 = vld [vmem:[#allocation2 + $0xb0] sm:$0xff]
          %v628 = vld [vmem:[#allocation2 + $0xb8] sm:$0xff]
          %v629 = vld [vmem:[#allocation2 + $0xc0] sm:$0xff]
          %v630 = vld [vmem:[#allocation2 + $0xc8] sm:$0xff]
          %v631 = vld [vmem:[#allocation2 + $0xd0] sm:$0xff]
          %v632 = vld [vmem:[#allocation2 + $0xd8] sm:$0xff]
          %v633 = vld [vmem:[#allocation2 + $0xe0] sm:$0xff]
          %v634 = vld [vmem:[#allocation2 + $0xe8] sm:$0xff]
          %v635 = vld [vmem:[#allocation2 + $0xf0] sm:$0xff]
          %v636 = vld [vmem:[#allocation2 + $0xf8] sm:$0xff]
          %v637 = vld [vmem:[%s2] sm:$0x1]
          %v639 = vperm.slane %v637, 0
          %v641 = vadd.f32 %v605, %v639
          %v642 = vadd.f32 %v606, %v639
          %v643 = vadd.f32 %v607, %v639
          %v644 = vadd.f32 %v608, %v639
          %v645 = vadd.f32 %v609, %v639
          %v646 = vadd.f32 %v610, %v639
          %v647 = vadd.f32 %v611, %v639
          %v648 = vadd.f32 %v612, %v639
          %v649 = vadd.f32 %v613, %v639
          %v650 = vadd.f32 %v614, %v639
          %v651 = vadd.f32 %v615, %v639
          %v652 = vadd.f32 %v616, %v639
          %v653 = vadd.f32 %v617, %v639
          %v654 = vadd.f32 %v618, %v639
          %v655 = vadd.f32 %v619, %v639
          %v656 = vadd.f32 %v620, %v639
          %v657 = vadd.f32 %v621, %v639
          %v658 = vadd.f32 %v622, %v639
          %v659 = vadd.f32 %v623, %v639
          %v660 = vadd.f32 %v624, %v639
          %v661 = vadd.f32 %v625, %v639
          %v662 = vadd.f32 %v626, %v639
          %v663 = vadd.f32 %v627, %v639
          %v664 = vadd.f32 %v628, %v639
          %v665 = vadd.f32 %v629, %v639
          %v666 = vadd.f32 %v630, %v639
          %v667 = vadd.f32 %v631, %v639
          %v668 = vadd.f32 %v632, %v639
          %v669 = vadd.f32 %v633, %v639
          %v670 = vadd.f32 %v634, %v639
          %v671 = vadd.f32 %v635, %v639
          %v672 = vadd.f32 %v636, %v639
          %673 = vst [vmem:[%s184] sm:$0xff] %v641
          %674 = vst [vmem:[%s184 + $0x8] sm:$0xff] %v642
          %675 = vst [vmem:[%s184 + $0x10] sm:$0xff] %v643
          %676 = vst [vmem:[%s184 + $0x18] sm:$0xff] %v644
          %677 = vst [vmem:[%s184 + $0x20] sm:$0xff] %v645
          %678 = vst [vmem:[%s184 + $0x28] sm:$0xff] %v646
          %679 = vst [vmem:[%s184 + $0x30] sm:$0xff] %v647
          %680 = vst [vmem:[%s184 + $0x38] sm:$0xff] %v648
          %681 = vst [vmem:[%s184 + $0x40] sm:$0xff] %v649
          %682 = vst [vmem:[%s184 + $0x48] sm:$0xff] %v650
          %683 = vst [vmem:[%s184 + $0x50] sm:$0xff] %v651
          %684 = vst [vmem:[%s184 + $0x58] sm:$0xff] %v652
          %685 = vst [vmem:[%s184 + $0x60] sm:$0xff] %v653
          %686 = vst [vmem:[%s184 + $0x68] sm:$0xff] %v654
          %687 = vst [vmem:[%s184 + $0x70] sm:$0xff] %v655
          %688 = vst [vmem:[%s184 + $0x78] sm:$0xff] %v656
          %689 = vst [vmem:[%s184 + $0x80] sm:$0xff] %v657
          %690 = vst [vmem:[%s184 + $0x88] sm:$0xff] %v658
          %691 = vst [vmem:[%s184 + $0x90] sm:$0xff] %v659
          %692 = vst [vmem:[%s184 + $0x98] sm:$0xff] %v660
          %693 = vst [vmem:[%s184 + $0xa0] sm:$0xff] %v661
          %694 = vst [vmem:[%s184 + $0xa8] sm:$0xff] %v662
          %695 = vst [vmem:[%s184 + $0xb0] sm:$0xff] %v663
          %696 = vst [vmem:[%s184 + $0xb8] sm:$0xff] %v664
          %697 = vst [vmem:[%s184 + $0xc0] sm:$0xff] %v665
          %698 = vst [vmem:[%s184 + $0xc8] sm:$0xff] %v666
          %699 = vst [vmem:[%s184 + $0xd0] sm:$0xff] %v667
          %700 = vst [vmem:[%s184 + $0xd8] sm:$0xff] %v668
          %701 = vst [vmem:[%s184 + $0xe0] sm:$0xff] %v669
          %702 = vst [vmem:[%s184 + $0xe8] sm:$0xff] %v670
          %703 = vst [vmem:[%s184 + $0xf0] sm:$0xff] %v671
          %704 = vst [vmem:[%s184 + $0xf8] sm:$0xff] %v672
        $region40: #{tpu_custom_call.1} parent=31 // pred_fallthru
          _
        %s705 = sand.u32 %s107, 1
        %s706 = scalar_lea.sflag [#allocation4], %s705
        %s707 = sand.u32 %s107, 1
        %s708 = smul.addr %s707, 256
        %s709 = scalar_lea.vmem [#allocation3], %s708
        // Predicated region
        $region41: #{tpu_custom_call.1} parent=31 // pred_check
          %p710 = pneg %p117
        $region42: #{tpu_custom_call.1} parent=31 // pred_check_branch
          %712 = sbr.rel (%p710) target = $region44
        $region43: #{tpu_custom_call.1} parent=31 // pred_region
          %s713 = smul.u32 32, %s21
          %715 = vsyncadd %s706, 0
          %s716 = smul.addr %s713, 8
          %s717 = scalar_lea.hbm %s3, %s716
          %s718 = sshll.u32 %s709, 4
          %s719 = int_to_ptr.vmem [resolvable:$true] %s718
          %s720 = sshll.u32 %s717, 4
          %s721 = int_to_ptr.hbm [resolvable:$true] %s720
          %726 = dma.vmem_to_hbm [thread:$0]  %s719, 4096, %s721, %s706, 128, 128, 8
        $region44: #{tpu_custom_call.1} parent=31 // pred_fallthru
          _
      $region32: #{tpu_custom_call.1} parent=5 // pred_fallthru
        _
      %p727 = scmp.le.s32.totalorder 2, %s12
      // Predicated region
      $region45: #{tpu_custom_call.1} parent=5 // pred_check
        %p728 = pneg %p727
      $region46: #{tpu_custom_call.1} parent=5 // pred_check_branch
        %730 = sbr.rel (%p728) target = $region48
      $region47: #{tpu_custom_call.1} parent=5 // pred_region
        %s731 = ssub.s32 %s12, 2
        // Predicated region
        $region49: #{tpu_custom_call.1} parent=47 // pred_check
          %p732 = pneg %p123
        $region50: #{tpu_custom_call.1} parent=47 // pred_check_branch
          %734 = sbr.rel (%p732) target = $region52
        $region51: #{tpu_custom_call.1} parent=47 // pred_region
          %s735 = sand.u32 %s108, 1
          %s736 = scalar_lea.sflag [#allocation4], %s735
          %s737 = sand.u32 %s108, 1
          %s738 = smul.addr %s737, 256
          %s739 = scalar_lea.vmem [#allocation3], %s738
          %741 = dma.done %s736, 4096
        $region52: #{tpu_custom_call.1} parent=47 // pred_fallthru
          _
      $region48: #{tpu_custom_call.1} parent=5 // pred_fallthru
        _
    $region6: #{tpu_custom_call.1} parent=1 // loop_footer
      %s16 = sadd.s32 1, %s12
    $region7: #{tpu_custom_call.1} parent=1 // loop_footer_branch
      %11 = sbr.rel target = $region3
    $region8: #{tpu_custom_call.1} parent=1 // loop_exit
      _
    %742 = vsyncpa [#allocation4], 1
    %s743 = scalar_lea.sflag [#allocation4], 1
    %744 = vsyncpa %s743, 1

</llo_original>
